<compile_context>
chip_gen: v7x
topology: tpu7x:2x2x1
jax: 0.10.0
libtpu: 0.0.40
codegen_flags: <defaults>
</compile_context>

<pallas_src>
import math

import jax
import jax.numpy as jnp
from jax import lax
from jax.experimental import pallas as pl
from jax.experimental.pallas import tpu as pltpu


def _round_up(a, m):
    return (a + m - 1) // m * m


# ---------------------------------------------------------------------------
# Kernel 1: fused RMSNorm (over channels) + 1x1-conv QKV projection.
#   x_ref : (TM, C)       rows = pixels (b, y, x), cols = channels (lane axis)
#   g_ref : (1, C)        RMSNorm gain
#   w_ref : (C, 3*HID)    to_qkv weight, (in, out) layout
#   o_ref : (TM, 3*HID)   lane-dense output (3*HID multiple of 128)
# ---------------------------------------------------------------------------
def _rmsnorm_qkv_kernel(x_ref, g_ref, w_ref, o_ref):
    x = x_ref[...]                                           # (TM, C) f32
    c = x_ref.shape[-1]
    ss = jnp.sum(x * x, axis=-1, keepdims=True)              # (TM, 1)
    inv = 1.0 / jnp.maximum(jnp.sqrt(ss), 1e-12)             # F.normalize eps
    xn = x * inv * (g_ref[...] * (c ** 0.5))                 # (TM, C)
    o_ref[...] = jnp.dot(
        xn, w_ref[...], preferred_element_type=jnp.float32
    ).astype(o_ref.dtype)


def _rmsnorm_qkv(x_rows, g_row, w_qkv):
    bn, c = x_rows.shape
    out_dim = w_qkv.shape[1]
    tm = min(512, _round_up(bn, 8))
    bn_pad = _round_up(bn, tm)
    if bn_pad != bn:
        x_rows = jnp.pad(x_rows, ((0, bn_pad - bn), (0, 0)))

    out = pl.pallas_call(
        _rmsnorm_qkv_kernel,
        out_shape=jax.ShapeDtypeStruct((bn_pad, out_dim), jnp.float32),
        grid_spec=pltpu.PrefetchScalarGridSpec(
            num_scalar_prefetch=0,
            grid=(bn_pad // tm,),
            in_specs=[
                pl.BlockSpec((tm, c), lambda i: (i, 0)),
                pl.BlockSpec((1, c), lambda i: (0, 0)),
                pl.BlockSpec((c, out_dim), lambda i: (0, 0)),
            ],
            out_specs=pl.BlockSpec((tm, out_dim), lambda i: (i, 0)),
        ),
        compiler_params=pltpu.CompilerParams(
            dimension_semantics=("parallel",)),
        cost_estimate=pl.CostEstimate(
            flops=2 * bn_pad * c * out_dim + 4 * bn_pad * c,
            transcendentals=bn_pad,
            bytes_accessed=4 * (bn_pad * c + c * out_dim + bn_pad * out_dim)),
    )(x_rows, g_row, w_qkv)
    return out[:bn]


# ---------------------------------------------------------------------------
# Kernel 2: per-(batch, q-tile) attention; heads = innermost reduction axis
# that accumulates the 1x1 output projection into a VMEM scratch.
#   q_ref : (TQ, D)   k_ref/v_ref : (M, D)   wo_ref : (D, C)   bo_ref : (1, C)
#   o_ref : (TQ, C)   acc_ref (scratch) : (TQ, C) f32
# ---------------------------------------------------------------------------
def _attn_outproj_kernel(q_ref, k_ref, v_ref, wo_ref, bo_ref, o_ref, acc_ref):
    h = pl.program_id(2)

    @pl.when(h == 0)
    def _():
        acc_ref[...] = jnp.zeros_like(acc_ref)

    q = q_ref[...]                                            # (TQ, D)
    k = k_ref[...]                                            # (M,  D)
    v = v_ref[...]                                            # (M,  D)
    scale = q_ref.shape[-1] ** -0.5

    s = lax.dot_general(q, k, (((1,), (1,)), ((), ())),
                        preferred_element_type=jnp.float32) * scale  # (TQ, M)
    m = jnp.max(s, axis=-1, keepdims=True)
    p = jnp.exp(s - m)
    l = jnp.sum(p, axis=-1, keepdims=True)
    p = p * pl.reciprocal(l, approx=False)                    # softmax

    o_h = jnp.dot(p, v, preferred_element_type=jnp.float32)   # (TQ, D)
    acc_ref[...] += jnp.dot(o_h, wo_ref[...],
                            preferred_element_type=jnp.float32)  # (TQ, C)

    @pl.when(h == pl.num_programs(2) - 1)
    def _():
        o_ref[...] = (acc_ref[...] + bo_ref[...]).astype(o_ref.dtype)


def _attention_core(q, k, v, w_out, b_out):
    # q: (B, H, N, D); k, v: (B, H, M, D); w_out: (HID, C); b_out: (C,)
    b, heads, n, d = q.shape
    m = k.shape[2]
    c = w_out.shape[1]

    n_pad = _round_up(n, 8)
    tq = min(512, n_pad)
    n_pad = _round_up(n_pad, tq)
    if n_pad != n:
        q = jnp.pad(q, ((0, 0), (0, 0), (0, n_pad - n), (0, 0)))

    wo3 = w_out.reshape(heads, d, c)   # per-head slice of output projection
    bo2 = b_out.reshape(1, c)

    out = pl.pallas_call(
        _attn_outproj_kernel,
        out_shape=jax.ShapeDtypeStruct((b, n_pad, c), jnp.float32),
        grid_spec=pltpu.PrefetchScalarGridSpec(
            num_scalar_prefetch=0,
            grid=(b, n_pad // tq, heads),
            in_specs=[
                pl.BlockSpec((None, None, tq, d),
                             lambda bi, qi, hi: (bi, hi, qi, 0)),
                pl.BlockSpec((None, None, m, d),
                             lambda bi, qi, hi: (bi, hi, 0, 0)),
                pl.BlockSpec((None, None, m, d),
                             lambda bi, qi, hi: (bi, hi, 0, 0)),
                pl.BlockSpec((None, d, c),
                             lambda bi, qi, hi: (hi, 0, 0)),
                pl.BlockSpec((1, c),
                             lambda bi, qi, hi: (0, 0)),
            ],
            out_specs=pl.BlockSpec((None, tq, c),
                                   lambda bi, qi, hi: (bi, qi, 0)),
            scratch_shapes=[pltpu.VMEM((tq, c), jnp.float32)],
        ),
        compiler_params=pltpu.CompilerParams(
            dimension_semantics=("parallel", "parallel", "arbitrary")),
        cost_estimate=pl.CostEstimate(
            flops=b * heads * (4 * n_pad * m * d + 2 * n_pad * d * c),
            transcendentals=b * heads * n_pad * m,
            bytes_accessed=4 * (b * heads * n_pad * d + 2 * b * heads * m * d
                                + heads * d * c + b * n_pad * c)),
    )(q, k, v, wo3, bo2)
    return out[:, :n, :]


def attention_forward(x, g, w_qkv, mem_kv, w_out, b_out, *, heads, dim_head):
    """Forward pass of the PyTorch `Attention` module. x: (B, C, H, W) f32."""
    b, c, hh, ww = x.shape
    n = hh * ww
    num_mem = mem_kv.shape[2]

    # (B, C, H, W) -> (B*N, C): pixels on rows, channels on the lane axis.
    x_rows = x.transpose(0, 2, 3, 1).reshape(b * n, c).astype(jnp.float32)
    g_row = g.reshape(1, c).astype(jnp.float32)

    qkv = _rmsnorm_qkv(x_rows, g_row, w_qkv.astype(jnp.float32))  # (B*N, 3*HID)
    qkv = qkv.reshape(b, n, 3, heads, dim_head)
    q = qkv[:, :, 0].transpose(0, 2, 1, 3)                        # (B, H, N, D)
    k = qkv[:, :, 1].transpose(0, 2, 1, 3)
    v = qkv[:, :, 2].transpose(0, 2, 1, 3)

    mem_kv = mem_kv.astype(jnp.float32)
    mk = jnp.broadcast_to(mem_kv[0][None], (b, heads, num_mem, dim_head))
    mv = jnp.broadcast_to(mem_kv[1][None], (b, heads, num_mem, dim_head))
    k = jnp.concatenate([mk, k], axis=2)                          # (B, H, M, D)
    v = jnp.concatenate([mv, v], axis=2)

    out_rows = _attention_core(q, k, v, w_out.astype(jnp.float32),
                               b_out.astype(jnp.float32))         # (B, N, C)
    return out_rows.transpose(0, 2, 1).reshape(b, c, hh, ww)


# ---------------------------------------------------------------------------
# Pure-JAX reference mirroring the PyTorch forward (for validation).
# ---------------------------------------------------------------------------
def _reference(x, g, w_qkv, mem_kv, w_out, b_out, *, heads, dim_head):
    b, c, hh, ww = x.shape
    n = hh * ww
    norm = jnp.sqrt(jnp.sum(x * x, axis=1, keepdims=True))
    xn = x / jnp.maximum(norm, 1e-12) * g.reshape(1, c, 1, 1) * (c ** 0.5)
    qkv = jnp.einsum('bchw,cd->bdhw', xn, w_qkv)
    q, k, v = jnp.split(qkv, 3, axis=1)

    def to_bhnd(t):  # 'b (h c) x y -> b h (x y) c'
        return t.reshape(b, heads, dim_head, n).transpose(0, 1, 3, 2)

    q, k, v = map(to_bhnd, (q, k, v))
    num_mem = mem_kv.shape[2]
    mk = jnp.broadcast_to(mem_kv[0][None], (b, heads, num_mem, dim_head))
    mv = jnp.broadcast_to(mem_kv[1][None], (b, heads, num_mem, dim_head))
    k = jnp.concatenate([mk, k], axis=2)
    v = jnp.concatenate([mv, v], axis=2)
    sim = jnp.einsum('bhid,bhjd->bhij', q, k) * (dim_head ** -0.5)
    attn = jax.nn.softmax(sim, axis=-1)
    o = jnp.einsum('bhij,bhjd->bhid', attn, v)
    o = o.transpose(0, 1, 3, 2).reshape(b, heads * dim_head, hh, ww)
    return jnp.einsum('bchw,cd->bdhw', o, w_out) + b_out.reshape(1, c, 1, 1)


if __name__ == "__main__":
    key = jax.random.PRNGKey(0)
    ks = jax.random.split(key, 6)

    B, C, H, W = 2, 32, 8, 8
    HEADS, DIM_HEAD, NUM_MEM = 4, 32, 4
    HID = HEADS * DIM_HEAD

    x = jax.random.normal(ks[0], (B, C, H, W), dtype=jnp.float32)
    g = 1.0 + 0.2 * jax.random.normal(ks[1], (C,), dtype=jnp.float32)
    w_qkv = jax.random.normal(ks[2], (C, 3 * HID), dtype=jnp.float32) / math.sqrt(C)
    mem_kv = jax.random.normal(ks[3], (2, HEADS, NUM_MEM, DIM_HEAD), dtype=jnp.float32)
    w_out = jax.random.normal(ks[4], (HID, C), dtype=jnp.float32) / math.sqrt(HID)
    b_out = 0.1 * jax.random.normal(ks[5], (C,), dtype=jnp.float32)

    out = attention_forward(x, g, w_qkv, mem_kv, w_out, b_out,
                            heads=HEADS, dim_head=DIM_HEAD)
    out = jax.block_until_ready(out)

    ref = _reference(x, g, w_qkv, mem_kv, w_out, b_out,
                     heads=HEADS, dim_head=DIM_HEAD)
    assert out.shape == (B, C, H, W), out.shape
    max_err = float(jnp.max(jnp.abs(out - ref)))
    assert jnp.allclose(out, ref, atol=3e-2, rtol=3e-2), f"max_err={max_err}"

    print("KERNEL_OK")
</pallas_src>

<mosaic_0001>
module attributes {stable_mosaic.version = 11 : i64} {
  func.func @_rmsnorm_qkv_kernel(%arg0: i32, %arg1: memref<128x32xf32, #tpu.memory_space<vmem>>, %arg2: memref<1x32xf32, #tpu.memory_space<vmem>>, %arg3: memref<32x384xf32, #tpu.memory_space<vmem>>, %arg4: memref<128x384xf32, #tpu.memory_space<vmem>>) attributes {dimension_semantics = [#tpu.dimension_semantics<parallel>], iteration_bounds = array<i64: 1>, scalar_prefetch = 0 : i64, scratch_operands = 0 : i64, tpu.core_type = #tpu.core_type<tc>, window_params = [{transform_indices = @transform_0, window_bounds = array<i64: 128, 32>}, {pipeline_mode = #tpu.pipeline_mode<synchronous>, transform_indices = @transform_1, window_bounds = array<i64: 1, 32>}, {pipeline_mode = #tpu.pipeline_mode<synchronous>, transform_indices = @transform_2, window_bounds = array<i64: 32, 384>}, {transform_indices = @transform_3, window_bounds = array<i64: 128, 384>}]} {
    %c0 = arith.constant 0 : index
    %c0_0 = arith.constant 0 : index
    %0 = vector.load %arg1[%c0, %c0_0] : memref<128x32xf32, #tpu.memory_space<vmem>>, vector<128x32xf32>
    %1 = arith.mulf %0, %0 : vector<128x32xf32>
    %cst = arith.constant dense<0.000000e+00> : vector<128xf32>
    %2 = vector.multi_reduction <add>, %1, %cst [1] : vector<128x32xf32> to vector<128xf32>
    %3 = vector.shape_cast %2 : vector<128xf32> to vector<128x1xf32>
    %4 = math.sqrt %3 : vector<128x1xf32>
    %cst_1 = arith.constant 9.99999996E-13 : f32
    %5 = vector.broadcast %cst_1 : f32 to vector<128x1xf32>
    %6 = arith.maximumf %4, %5 : vector<128x1xf32>
    %cst_2 = arith.constant 1.000000e+00 : f32
    %7 = vector.broadcast %cst_2 : f32 to vector<128x1xf32>
    %8 = arith.divf %7, %6 : vector<128x1xf32>
    %9 = vector.broadcast %8 : vector<128x1xf32> to vector<128x32xf32>
    %10 = arith.mulf %0, %9 : vector<128x32xf32>
    %c0_3 = arith.constant 0 : index
    %c0_4 = arith.constant 0 : index
    %11 = vector.load %arg2[%c0_3, %c0_4] : memref<1x32xf32, #tpu.memory_space<vmem>>, vector<1x32xf32>
    %cst_5 = arith.constant 5.65685415 : f32
    %12 = vector.broadcast %cst_5 : f32 to vector<1x32xf32>
    %13 = arith.mulf %11, %12 : vector<1x32xf32>
    %14 = vector.broadcast %13 : vector<1x32xf32> to vector<128x32xf32>
    %15 = arith.mulf %10, %14 : vector<128x32xf32>
    %c0_6 = arith.constant 0 : index
    %c0_7 = arith.constant 0 : index
    %16 = vector.load %arg3[%c0_6, %c0_7] : memref<32x384xf32, #tpu.memory_space<vmem>>, vector<32x384xf32>
    %cst_8 = arith.constant dense<0.000000e+00> : vector<128x384xf32>
    %17 = tpu.matmul %15, %16, %cst_8 {dimension_numbers = #tpu.dot_dimension_numbers<[1], [0], [0], [1], [0, 0, 1, 1], [], []>} : vector<128x32xf32>, vector<32x384xf32>, vector<128x384xf32> -> vector<128x384xf32>
    %c0_9 = arith.constant 0 : index
    %c0_10 = arith.constant 0 : index
    %18 = vector.load %arg4[%c0_9, %c0_10] : memref<128x384xf32, #tpu.memory_space<vmem>>, vector<128x384xf32>
    tpu.vector_store %arg4[%c0_9, %c0_10], %17 {strides = array<i32>} : memref<128x384xf32, #tpu.memory_space<vmem>>, vector<128x384xf32>,
    return
  }
  func.func @transform_0(%arg0: i32) -> (i32, i32) {
    %c0_i32 = arith.constant 0 : i32
    %c0_i32_0 = arith.constant 0 : i32
    return %arg0, %c0_i32 : i32, i32
  }
  func.func @transform_1(%arg0: i32) -> (i32, i32) {
    %c0_i32 = arith.constant 0 : i32
    %c0_i32_0 = arith.constant 0 : i32
    %c0_i32_1 = arith.constant 0 : i32
    return %c0_i32, %c0_i32_0 : i32, i32
  }
  func.func @transform_2(%arg0: i32) -> (i32, i32) {
    %c0_i32 = arith.constant 0 : i32
    %c0_i32_0 = arith.constant 0 : i32
    %c0_i32_1 = arith.constant 0 : i32
    return %c0_i32, %c0_i32_0 : i32, i32
  }
  func.func @transform_3(%arg0: i32) -> (i32, i32) {
    %c0_i32 = arith.constant 0 : i32
    %c0_i32_0 = arith.constant 0 : i32
    return %arg0, %c0_i32 : i32, i32
  }
}

</mosaic_0001>

<llo_original>
// kernel: tpu_custom_call.1
$region0: #{tpu_custom_call.1}
  #allocation0 [shape = 'u32[]', space=smem, size = 0x4, offset = 0x4, fixed_abs, tag = 'smem constant byte address 0x4 - core index']
  #allocation1 [shape = 'u32[144,128]{1,0:T(1,128)}', space=vmem, size = 0x12000, scoped, tag = 'internal scratch']
  %s0 = inlined_call_operand.vmem [shape: f32[128,32], index: 0, kind: input, shape index: {}]
  %s1 = inlined_call_operand.vmem [shape: f32[1,32], index: 1, kind: input, shape index: {}]
  %s2 = inlined_call_operand.vmem [shape: f32[32,384], index: 2, kind: input, shape index: {}]
  %s3 = inlined_call_operand.hbm [shape: f32[128,384], index: 3, kind: output, shape index: {}]
  %s4 = sld [smem:[#allocation0]]
  $region22: #{tpu_custom_call.1} parent=0
    _
  %s6 = ssub.s32 1, %s4
  %s7 = scalar_select 0, %s6, %s4
  $region1: #{tpu_custom_call.1} parent=0
    #allocation2 [shape = 'u8[196608]{0}', space=vmem, size = 0x30000, scoped, tag = 'output window, operand 0, single buffered']
    #allocation3 [shape = 's32[1]{0}', space=sflag, size = 0x4, scoped, tag = 'scoped memory for tpu_custom_call.1']
    %8 = vsyncpa [#allocation3], 0
    // Predicated region
    $region2: #{tpu_custom_call.1} parent=1 // pred_check
      _
    $region3: #{tpu_custom_call.1} parent=1 // pred_check_branch
      %10 = sbr.rel (0) target = $region5
    $region4: #{tpu_custom_call.1} parent=1 // pred_region
      _
    $region5: #{tpu_custom_call.1} parent=1 // pred_fallthru
      _
    // Predicated region
    $region6: #{tpu_custom_call.1} parent=1 // pred_check
      _
    $region7: #{tpu_custom_call.1} parent=1 // pred_check_branch
      %12 = sbr.rel (0) target = $region9
    $region8: #{tpu_custom_call.1} parent=1 // pred_region
      _
    $region9: #{tpu_custom_call.1} parent=1 // pred_fallthru
      _
    // Predicated region
    $region10: #{tpu_custom_call.1} parent=1 // pred_check
      _
    $region11: #{tpu_custom_call.1} parent=1 // pred_check_branch
      %14 = sbr.rel (0) target = $region13
    $region12: #{tpu_custom_call.1} parent=1 // pred_region
      _
    $region13: #{tpu_custom_call.1} parent=1 // pred_fallthru
      _
    %v15 = vld [vmem:[%s0] sm:$0xff]
    %v16 = vld [vmem:[%s0 + $0x8] sm:$0xff]
    %v17 = vld [vmem:[%s0 + $0x10] sm:$0xff]
    %v18 = vld [vmem:[%s0 + $0x18] sm:$0xff]
    %v19 = vld [vmem:[%s0 + $0x20] sm:$0xff]
    %v20 = vld [vmem:[%s0 + $0x28] sm:$0xff]
    %v21 = vld [vmem:[%s0 + $0x30] sm:$0xff]
    %v22 = vld [vmem:[%s0 + $0x38] sm:$0xff]
    %v23 = vld [vmem:[%s0 + $0x40] sm:$0xff]
    %v24 = vld [vmem:[%s0 + $0x48] sm:$0xff]
    %v25 = vld [vmem:[%s0 + $0x50] sm:$0xff]
    %v26 = vld [vmem:[%s0 + $0x58] sm:$0xff]
    %v27 = vld [vmem:[%s0 + $0x60] sm:$0xff]
    %v28 = vld [vmem:[%s0 + $0x68] sm:$0xff]
    %v29 = vld [vmem:[%s0 + $0x70] sm:$0xff]
    %v30 = vld [vmem:[%s0 + $0x78] sm:$0xff]
    %v31 = vmul.f32 %v15, %v15
    %v32 = vmul.f32 %v16, %v16
    %v33 = vmul.f32 %v17, %v17
    %v34 = vmul.f32 %v18, %v18
    %v35 = vmul.f32 %v19, %v19
    %v36 = vmul.f32 %v20, %v20
    %v37 = vmul.f32 %v21, %v21
    %v38 = vmul.f32 %v22, %v22
    %v39 = vmul.f32 %v23, %v23
    %v40 = vmul.f32 %v24, %v24
    %v41 = vmul.f32 %v25, %v25
    %v42 = vmul.f32 %v26, %v26
    %v43 = vmul.f32 %v27, %v27
    %v44 = vmul.f32 %v28, %v28
    %v45 = vmul.f32 %v29, %v29
    %v46 = vmul.f32 %v30, %v30
    %vm47 = vcmask 261120
    %v48 = vsel %vm47, %v31, 0.0
    %49 = vadd.xlane.f32.xlu0 %v48
    %v50 = vpop.xlane.xlu0 %49
    %v51 = vsel %vm47, %v32, 0.0
    %52 = vadd.xlane.f32.xlu0 %v51
    %v53 = vpop.xlane.xlu0 %52
    %v54 = vsel %vm47, %v33, 0.0
    %55 = vadd.xlane.f32.xlu0 %v54
    %v56 = vpop.xlane.xlu0 %55
    %v57 = vsel %vm47, %v34, 0.0
    %58 = vadd.xlane.f32.xlu0 %v57
    %v59 = vpop.xlane.xlu0 %58
    %v60 = vsel %vm47, %v35, 0.0
    %61 = vadd.xlane.f32.xlu0 %v60
    %v62 = vpop.xlane.xlu0 %61
    %v63 = vsel %vm47, %v36, 0.0
    %64 = vadd.xlane.f32.xlu0 %v63
    %v65 = vpop.xlane.xlu0 %64
    %v66 = vsel %vm47, %v37, 0.0
    %67 = vadd.xlane.f32.xlu0 %v66
    %v68 = vpop.xlane.xlu0 %67
    %v69 = vsel %vm47, %v38, 0.0
    %70 = vadd.xlane.f32.xlu0 %v69
    %v71 = vpop.xlane.xlu0 %70
    %v72 = vsel %vm47, %v39, 0.0
    %73 = vadd.xlane.f32.xlu0 %v72
    %v74 = vpop.xlane.xlu0 %73
    %v75 = vsel %vm47, %v40, 0.0
    %76 = vadd.xlane.f32.xlu0 %v75
    %v77 = vpop.xlane.xlu0 %76
    %v78 = vsel %vm47, %v41, 0.0
    %79 = vadd.xlane.f32.xlu0 %v78
    %v80 = vpop.xlane.xlu0 %79
    %v81 = vsel %vm47, %v42, 0.0
    %82 = vadd.xlane.f32.xlu0 %v81
    %v83 = vpop.xlane.xlu0 %82
    %v84 = vsel %vm47, %v43, 0.0
    %85 = vadd.xlane.f32.xlu0 %v84
    %v86 = vpop.xlane.xlu0 %85
    %v87 = vsel %vm47, %v44, 0.0
    %88 = vadd.xlane.f32.xlu0 %v87
    %v89 = vpop.xlane.xlu0 %88
    %v90 = vsel %vm47, %v45, 0.0
    %91 = vadd.xlane.f32.xlu0 %v90
    %v92 = vpop.xlane.xlu0 %91
    %v93 = vsel %vm47, %v46, 0.0
    %94 = vadd.xlane.f32.xlu0 %v93
    %v95 = vpop.xlane.xlu0 %94
    %v96 = vrsqrt.pop %v50
    %v97 = vmul.f32 %v50, %v96
    %vm98 = vcmp.eq.f32.partialorder %v50, inf
    %v99 = vsel %vm98, %v50, %v97
    %vm100 = vcmp.eq.f32.partialorder %v50, 0.0
    %v101 = vand.u32 %v50, 2147483648
    %v102 = vsel %vm100, %v101, %v99
    %v103 = vrsqrt.pop %v53
    %v104 = vmul.f32 %v53, %v103
    %vm105 = vcmp.eq.f32.partialorder %v53, inf
    %v106 = vsel %vm105, %v53, %v104
    %vm107 = vcmp.eq.f32.partialorder %v53, 0.0
    %v108 = vand.u32 %v53, 2147483648
    %v109 = vsel %vm107, %v108, %v106
    %v110 = vrsqrt.pop %v56
    %v111 = vmul.f32 %v56, %v110
    %vm112 = vcmp.eq.f32.partialorder %v56, inf
    %v113 = vsel %vm112, %v56, %v111
    %vm114 = vcmp.eq.f32.partialorder %v56, 0.0
    %v115 = vand.u32 %v56, 2147483648
    %v116 = vsel %vm114, %v115, %v113
    %v117 = vrsqrt.pop %v59
    %v118 = vmul.f32 %v59, %v117
    %vm119 = vcmp.eq.f32.partialorder %v59, inf
    %v120 = vsel %vm119, %v59, %v118
    %vm121 = vcmp.eq.f32.partialorder %v59, 0.0
    %v122 = vand.u32 %v59, 2147483648
    %v123 = vsel %vm121, %v122, %v120
    %v124 = vrsqrt.pop %v62
    %v125 = vmul.f32 %v62, %v124
    %vm126 = vcmp.eq.f32.partialorder %v62, inf
    %v127 = vsel %vm126, %v62, %v125
    %vm128 = vcmp.eq.f32.partialorder %v62, 0.0
    %v129 = vand.u32 %v62, 2147483648
    %v130 = vsel %vm128, %v129, %v127
    %v131 = vrsqrt.pop %v65
    %v132 = vmul.f32 %v65, %v131
    %vm133 = vcmp.eq.f32.partialorder %v65, inf
    %v134 = vsel %vm133, %v65, %v132
    %vm135 = vcmp.eq.f32.partialorder %v65, 0.0
    %v136 = vand.u32 %v65, 2147483648
    %v137 = vsel %vm135, %v136, %v134
    %v138 = vrsqrt.pop %v68
    %v139 = vmul.f32 %v68, %v138
    %vm140 = vcmp.eq.f32.partialorder %v68, inf
    %v141 = vsel %vm140, %v68, %v139
    %vm142 = vcmp.eq.f32.partialorder %v68, 0.0
    %v143 = vand.u32 %v68, 2147483648
    %v144 = vsel %vm142, %v143, %v141
    %v145 = vrsqrt.pop %v71
    %v146 = vmul.f32 %v71, %v145
    %vm147 = vcmp.eq.f32.partialorder %v71, inf
    %v148 = vsel %vm147, %v71, %v146
    %vm149 = vcmp.eq.f32.partialorder %v71, 0.0
    %v150 = vand.u32 %v71, 2147483648
    %v151 = vsel %vm149, %v150, %v148
    %v152 = vrsqrt.pop %v74
    %v153 = vmul.f32 %v74, %v152
    %vm154 = vcmp.eq.f32.partialorder %v74, inf
    %v155 = vsel %vm154, %v74, %v153
    %vm156 = vcmp.eq.f32.partialorder %v74, 0.0
    %v157 = vand.u32 %v74, 2147483648
    %v158 = vsel %vm156, %v157, %v155
    %v159 = vrsqrt.pop %v77
    %v160 = vmul.f32 %v77, %v159
    %vm161 = vcmp.eq.f32.partialorder %v77, inf
    %v162 = vsel %vm161, %v77, %v160
    %vm163 = vcmp.eq.f32.partialorder %v77, 0.0
    %v164 = vand.u32 %v77, 2147483648
    %v165 = vsel %vm163, %v164, %v162
    %v166 = vrsqrt.pop %v80
    %v167 = vmul.f32 %v80, %v166
    %vm168 = vcmp.eq.f32.partialorder %v80, inf
    %v169 = vsel %vm168, %v80, %v167
    %vm170 = vcmp.eq.f32.partialorder %v80, 0.0
    %v171 = vand.u32 %v80, 2147483648
    %v172 = vsel %vm170, %v171, %v169
    %v173 = vrsqrt.pop %v83
    %v174 = vmul.f32 %v83, %v173
    %vm175 = vcmp.eq.f32.partialorder %v83, inf
    %v176 = vsel %vm175, %v83, %v174
    %vm177 = vcmp.eq.f32.partialorder %v83, 0.0
    %v178 = vand.u32 %v83, 2147483648
    %v179 = vsel %vm177, %v178, %v176
    %v180 = vrsqrt.pop %v86
    %v181 = vmul.f32 %v86, %v180
    %vm182 = vcmp.eq.f32.partialorder %v86, inf
    %v183 = vsel %vm182, %v86, %v181
    %vm184 = vcmp.eq.f32.partialorder %v86, 0.0
    %v185 = vand.u32 %v86, 2147483648
    %v186 = vsel %vm184, %v185, %v183
    %v187 = vrsqrt.pop %v89
    %v188 = vmul.f32 %v89, %v187
    %vm189 = vcmp.eq.f32.partialorder %v89, inf
    %v190 = vsel %vm189, %v89, %v188
    %vm191 = vcmp.eq.f32.partialorder %v89, 0.0
    %v192 = vand.u32 %v89, 2147483648
    %v193 = vsel %vm191, %v192, %v190
    %v194 = vrsqrt.pop %v92
    %v195 = vmul.f32 %v92, %v194
    %vm196 = vcmp.eq.f32.partialorder %v92, inf
    %v197 = vsel %vm196, %v92, %v195
    %vm198 = vcmp.eq.f32.partialorder %v92, 0.0
    %v199 = vand.u32 %v92, 2147483648
    %v200 = vsel %vm198, %v199, %v197
    %v201 = vrsqrt.pop %v95
    %v202 = vmul.f32 %v95, %v201
    %vm203 = vcmp.eq.f32.partialorder %v95, inf
    %v204 = vsel %vm203, %v95, %v202
    %vm205 = vcmp.eq.f32.partialorder %v95, 0.0
    %v206 = vand.u32 %v95, 2147483648
    %v207 = vsel %vm205, %v206, %v204
    %v208 = vmax.f32 %v102, 1e-12
    %v209 = vmax.f32 %v109, 1e-12
    %v210 = vmax.f32 %v116, 1e-12
    %v211 = vmax.f32 %v123, 1e-12
    %v212 = vmax.f32 %v130, 1e-12
    %v213 = vmax.f32 %v137, 1e-12
    %v214 = vmax.f32 %v144, 1e-12
    %v215 = vmax.f32 %v151, 1e-12
    %v216 = vmax.f32 %v158, 1e-12
    %v217 = vmax.f32 %v165, 1e-12
    %v218 = vmax.f32 %v172, 1e-12
    %v219 = vmax.f32 %v179, 1e-12
    %v220 = vmax.f32 %v186, 1e-12
    %v221 = vmax.f32 %v193, 1e-12
    %v222 = vmax.f32 %v200, 1e-12
    %v223 = vmax.f32 %v207, 1e-12
    %v224 = vrcp.pop %v208
    %v225 = vmul.f32 1.0, %v224
    %v226 = vrcp.pop %v209
    %v227 = vmul.f32 1.0, %v226
    %v228 = vrcp.pop %v210
    %v229 = vmul.f32 1.0, %v228
    %v230 = vrcp.pop %v211
    %v231 = vmul.f32 1.0, %v230
    %v232 = vrcp.pop %v212
    %v233 = vmul.f32 1.0, %v232
    %v234 = vrcp.pop %v213
    %v235 = vmul.f32 1.0, %v234
    %v236 = vrcp.pop %v214
    %v237 = vmul.f32 1.0, %v236
    %v238 = vrcp.pop %v215
    %v239 = vmul.f32 1.0, %v238
    %v240 = vrcp.pop %v216
    %v241 = vmul.f32 1.0, %v240
    %v242 = vrcp.pop %v217
    %v243 = vmul.f32 1.0, %v242
    %v244 = vrcp.pop %v218
    %v245 = vmul.f32 1.0, %v244
    %v246 = vrcp.pop %v219
    %v247 = vmul.f32 1.0, %v246
    %v248 = vrcp.pop %v220
    %v249 = vmul.f32 1.0, %v248
    %v250 = vrcp.pop %v221
    %v251 = vmul.f32 1.0, %v250
    %v252 = vrcp.pop %v222
    %v253 = vmul.f32 1.0, %v252
    %v254 = vrcp.pop %v223
    %v255 = vmul.f32 1.0, %v254
    %v256 = vmul.f32 %v15, %v225
    %v257 = vmul.f32 %v16, %v227
    %v258 = vmul.f32 %v17, %v229
    %v259 = vmul.f32 %v18, %v231
    %v260 = vmul.f32 %v19, %v233
    %v261 = vmul.f32 %v20, %v235
    %v262 = vmul.f32 %v21, %v237
    %v263 = vmul.f32 %v22, %v239
    %v264 = vmul.f32 %v23, %v241
    %v265 = vmul.f32 %v24, %v243
    %v266 = vmul.f32 %v25, %v245
    %v267 = vmul.f32 %v26, %v247
    %v268 = vmul.f32 %v27, %v249
    %v269 = vmul.f32 %v28, %v251
    %v270 = vmul.f32 %v29, %v253
    %v271 = vmul.f32 %v30, %v255
    %v272 = vld [vmem:[%s1] sm:$0x1]
    %v273 = vmul.f32 %v272, 5.656854
    %v275 = vlaneseq
    %v276 = vshrl.u32 %v275, 7
    %v277 = vsub.s32 0, %v276
    %v278 = vrot.slane %v273, %v277
    %v280 = vmul.f32 %v256, %v278
    %v281 = vmul.f32 %v257, %v278
    %v282 = vmul.f32 %v258, %v278
    %v283 = vmul.f32 %v259, %v278
    %v284 = vmul.f32 %v260, %v278
    %v285 = vmul.f32 %v261, %v278
    %v286 = vmul.f32 %v262, %v278
    %v287 = vmul.f32 %v263, %v278
    %v288 = vmul.f32 %v264, %v278
    %v289 = vmul.f32 %v265, %v278
    %v290 = vmul.f32 %v266, %v278
    %v291 = vmul.f32 %v267, %v278
    %v292 = vmul.f32 %v268, %v278
    %v293 = vmul.f32 %v269, %v278
    %v294 = vmul.f32 %v270, %v278
    %v295 = vmul.f32 %v271, %v278
    %v296 = vld [vmem:[%s2] sm:$0xff]
    %v297 = vld [vmem:[%s2 + $0x8] sm:$0xff]
    %v298 = vld [vmem:[%s2 + $0x10] sm:$0xff]
    %v299 = vld [vmem:[%s2 + $0x18] sm:$0xff]
    %v300 = vld [vmem:[%s2 + $0x20] sm:$0xff]
    %v301 = vld [vmem:[%s2 + $0x28] sm:$0xff]
    %v302 = vld [vmem:[%s2 + $0x30] sm:$0xff]
    %v303 = vld [vmem:[%s2 + $0x38] sm:$0xff]
    %v304 = vld [vmem:[%s2 + $0x40] sm:$0xff]
    %v305 = vld [vmem:[%s2 + $0x48] sm:$0xff]
    %v306 = vld [vmem:[%s2 + $0x50] sm:$0xff]
    %v307 = vld [vmem:[%s2 + $0x58] sm:$0xff]
    %v309 = vsel %vm47, %v280, 0
    %v312 = vsel %vm47, %v281, 0
    %v315 = vsel %vm47, %v282, 0
    %v318 = vsel %vm47, %v283, 0
    %v321 = vsel %vm47, %v284, 0
    %v324 = vsel %vm47, %v285, 0
    %v327 = vsel %vm47, %v286, 0
    %v330 = vsel %vm47, %v287, 0
    %v333 = vsel %vm47, %v288, 0
    %v336 = vsel %vm47, %v289, 0
    %v339 = vsel %vm47, %v290, 0
    %v342 = vsel %vm47, %v291, 0
    %v345 = vsel %vm47, %v292, 0
    %v348 = vsel %vm47, %v293, 0
    %v351 = vsel %vm47, %v294, 0
    %v354 = vsel %vm47, %v295, 0
    %356 = vmatprep.subr.mxu0 %v297
    %357 = vmatpush1.msra.mxu0 %v296
    %358 = vmatprep.subr.mxu0 %v300
    %359 = vmatpush1.msra.mxu0 %v299
    %360 = vmatprep.subr.mxu0 %v303
    %361 = vmatpush1.msra.mxu0 %v302
    %362 = vmatprep.subr.mxu0 %v306
    %363 = vmatpush1.msra.mxu0 %v305
    %364 = vmatprep.subr.mxu0 0.0
    %365 = vmatpush1.msra.mxu0 0.0
    %366 = vmatprep.subr.mxu0 0.0
    %367 = vmatpush1.msra.mxu0 0.0
    %368 = vmatprep.subr.mxu0 0.0
    %369 = vmatpush1.msra.mxu0 0.0
    %370 = vmatprep.subr.mxu0 0.0
    %371 = vmatpush1.msra.mxu0 0.0
    %372 = vmatprep.subr.mxu0 0.0
    %373 = vmatpush1.msra.mxu0 0.0
    %374 = vmatprep.subr.mxu0 0.0
    %375 = vmatpush1.msra.mxu0 0.0
    %376 = vmatprep.subr.mxu0 0.0
    %377 = vmatpush1.msra.mxu0 0.0
    %378 = vmatprep.subr.mxu0 0.0
    %379 = vmatpush1.msra.mxu0 0.0
    %380 = vmatprep.subr.mxu0 0.0
    %381 = vmatpush1.msra.mxu0 0.0
    %382 = vmatprep.subr.mxu0 0.0
    %383 = vmatpush1.msra.mxu0 0.0
    %384 = vmatprep.subr.mxu0 0.0
    %385 = vmatpush1.msra.mxu0 0.0
    %386 = vmatprep.subr.mxu0 0.0
    %387 = vmatpush1.msra.mxu0 0.0
    %388 = vmatprep.subr.mxu0 0.0
    %389 = vmatpush1.msra.mxu0 0.0
    %390 = vmatprep.subr.mxu0 0.0
    %391 = vmatpush1.msra.mxu0 0.0
    %392 = vmatprep.subr.mxu0 0.0
    %393 = vmatpush1.msra.mxu0 0.0
    %394 = vmatprep.subr.mxu0 0.0
    %395 = vmatpush1.msra.mxu0 0.0
    %396 = vmatprep.subr.mxu0 0.0
    %397 = vmatpush1.msra.mxu0 0.0
    %398 = vmatprep.subr.mxu0 0.0
    %399 = vmatpush1.msra.mxu0 0.0
    %400 = vmatprep.subr.mxu0 0.0
    %401 = vmatpush1.msra.mxu0 0.0
    %402 = vmatprep.subr.mxu0 0.0
    %403 = vmatpush1.msra.mxu0 0.0
    %404 = vmatprep.subr.mxu0 0.0
    %405 = vmatpush1.msra.mxu0 0.0
    %406 = vmatprep.subr.mxu0 0.0
    %407 = vmatpush1.msra.mxu0 0.0
    %408 = vmatprep.subr.mxu0 0.0
    %409 = vmatpush1.msra.mxu0 0.0
    %410 = vmatprep.subr.mxu0 0.0
    %411 = vmatpush1.msra.mxu0 0.0
    %412 = vmatprep.subr.mxu0 0.0
    %413 = vmatpush1.msra.mxu0 0.0
    %414 = vmatprep.subr.mxu0 0.0
    %415 = vmatpush1.msra.mxu0 0.0
    %416 = vmatprep.subr.mxu0 0.0
    %417 = vmatpush1.msra.mxu0 0.0
    %418 = vmatprep.subr.mxu0 0.0
    %419 = vmatpush1.msra.mxu0 0.0
    %420 = vmatprep.mubr.f32.mxu0 0.0
    %421 = vmatmul.mubr.f32.gmra.mrb[0].mxu0 %v309
    %v422 = vpop.f32.mrb[0].mxu0
    %v423 = vadd.f32 0.0, %v422
    %v424 = vpop.f32.mrb[0].mxu0
    %v425 = vadd.f32 0.0, %v424
    %426 = vmatprep.mubr.f32.mxu0 0.0
    %427 = vmatmul.mubr.f32.gmra.mrb[0].mxu0 %v312
    %v428 = vpop.f32.mrb[0].mxu0
    %v429 = vadd.f32 0.0, %v428
    %v430 = vpop.f32.mrb[0].mxu0
    %v431 = vadd.f32 0.0, %v430
    %432 = vmatprep.mubr.f32.mxu0 0.0
    %433 = vmatmul.mubr.f32.gmra.mrb[0].mxu0 %v315
    %v434 = vpop.f32.mrb[0].mxu0
    %v435 = vadd.f32 0.0, %v434
    %v436 = vpop.f32.mrb[0].mxu0
    %v437 = vadd.f32 0.0, %v436
    %438 = vmatprep.mubr.f32.mxu0 0.0
    %439 = vmatmul.mubr.f32.gmra.mrb[0].mxu0 %v318
    %v440 = vpop.f32.mrb[0].mxu0
    %v441 = vadd.f32 0.0, %v440
    %v442 = vpop.f32.mrb[0].mxu0
    %v443 = vadd.f32 0.0, %v442
    %444 = vmatprep.mubr.f32.mxu0 0.0
    %445 = vmatmul.mubr.f32.gmra.mrb[0].mxu0 %v321
    %v446 = vpop.f32.mrb[0].mxu0
    %v447 = vadd.f32 0.0, %v446
    %v448 = vpop.f32.mrb[0].mxu0
    %v449 = vadd.f32 0.0, %v448
    %450 = vmatprep.mubr.f32.mxu0 0.0
    %451 = vmatmul.mubr.f32.gmra.mrb[0].mxu0 %v324
    %v452 = vpop.f32.mrb[0].mxu0
    %v453 = vadd.f32 0.0, %v452
    %v454 = vpop.f32.mrb[0].mxu0
    %v455 = vadd.f32 0.0, %v454
    %456 = vmatprep.mubr.f32.mxu0 0.0
    %457 = vmatmul.mubr.f32.gmra.mrb[0].mxu0 %v327
    %v458 = vpop.f32.mrb[0].mxu0
    %v459 = vadd.f32 0.0, %v458
    %v460 = vpop.f32.mrb[0].mxu0
    %v461 = vadd.f32 0.0, %v460
    %462 = vmatprep.mubr.f32.mxu0 0.0
    %463 = vmatmul.mubr.f32.gmra.mrb[0].mxu0 %v330
    %v464 = vpop.f32.mrb[0].mxu0
    %v465 = vadd.f32 0.0, %v464
    %v466 = vpop.f32.mrb[0].mxu0
    %v467 = vadd.f32 0.0, %v466
    %468 = vmatprep.mubr.f32.mxu0 0.0
    %469 = vmatmul.mubr.f32.gmra.mrb[0].mxu0 %v333
    %v470 = vpop.f32.mrb[0].mxu0
    %v471 = vadd.f32 0.0, %v470
    %v472 = vpop.f32.mrb[0].mxu0
    %v473 = vadd.f32 0.0, %v472
    %474 = vmatprep.mubr.f32.mxu0 0.0
    %475 = vmatmul.mubr.f32.gmra.mrb[0].mxu0 %v336
    %v476 = vpop.f32.mrb[0].mxu0
    %v477 = vadd.f32 0.0, %v476
    %v478 = vpop.f32.mrb[0].mxu0
    %v479 = vadd.f32 0.0, %v478
    %480 = vmatprep.mubr.f32.mxu0 0.0
    %481 = vmatmul.mubr.f32.gmra.mrb[0].mxu0 %v339
    %v482 = vpop.f32.mrb[0].mxu0
    %v483 = vadd.f32 0.0, %v482
    %v484 = vpop.f32.mrb[0].mxu0
    %v485 = vadd.f32 0.0, %v484
    %486 = vmatprep.mubr.f32.mxu0 0.0
    %487 = vmatmul.mubr.f32.gmra.mrb[0].mxu0 %v342
    %v488 = vpop.f32.mrb[0].mxu0
    %v489 = vadd.f32 0.0, %v488
    %v490 = vpop.f32.mrb[0].mxu0
    %v491 = vadd.f32 0.0, %v490
    %492 = vmatprep.mubr.f32.mxu0 0.0
    %493 = vmatmul.mubr.f32.gmra.mrb[0].mxu0 %v345
    %v494 = vpop.f32.mrb[0].mxu0
    %v495 = vadd.f32 0.0, %v494
    %v496 = vpop.f32.mrb[0].mxu0
    %v497 = vadd.f32 0.0, %v496
    %498 = vmatprep.mubr.f32.mxu0 0.0
    %499 = vmatmul.mubr.f32.gmra.mrb[0].mxu0 %v348
    %v500 = vpop.f32.mrb[0].mxu0
    %v501 = vadd.f32 0.0, %v500
    %v502 = vpop.f32.mrb[0].mxu0
    %v503 = vadd.f32 0.0, %v502
    %504 = vmatprep.mubr.f32.mxu0 0.0
    %505 = vmatmul.mubr.f32.gmra.mrb[0].mxu0 %v351
    %v506 = vpop.f32.mrb[0].mxu0
    %v507 = vadd.f32 0.0, %v506
    %v508 = vpop.f32.mrb[0].mxu0
    %v509 = vadd.f32 0.0, %v508
    %510 = vmatprep.mubr.f32.mxu0 0.0
    %511 = vmatmul.mubr.f32.gmra.mrb[0].mxu0 %v354
    %v512 = vpop.f32.mrb[0].mxu0
    %v513 = vadd.f32 0.0, %v512
    %v514 = vpop.f32.mrb[0].mxu0
    %v515 = vadd.f32 0.0, %v514
    %516 = vdwg.mxu0
    %517 = vmatprep.subr.mxu0 0.0
    %518 = vmatpush1.msra.mxu0 %v298
    %519 = vmatprep.subr.mxu0 0.0
    %520 = vmatpush1.msra.mxu0 %v301
    %521 = vmatprep.subr.mxu0 0.0
    %522 = vmatpush1.msra.mxu0 %v304
    %523 = vmatprep.subr.mxu0 0.0
    %524 = vmatpush1.msra.mxu0 %v307
    %525 = vmatprep.subr.mxu0 0.0
    %526 = vmatpush1.msra.mxu0 0.0
    %527 = vmatprep.subr.mxu0 0.0
    %528 = vmatpush1.msra.mxu0 0.0
    %529 = vmatprep.subr.mxu0 0.0
    %530 = vmatpush1.msra.mxu0 0.0
    %531 = vmatprep.subr.mxu0 0.0
    %532 = vmatpush1.msra.mxu0 0.0
    %533 = vmatprep.subr.mxu0 0.0
    %534 = vmatpush1.msra.mxu0 0.0
    %535 = vmatprep.subr.mxu0 0.0
    %536 = vmatpush1.msra.mxu0 0.0
    %537 = vmatprep.subr.mxu0 0.0
    %538 = vmatpush1.msra.mxu0 0.0
    %539 = vmatprep.subr.mxu0 0.0
    %540 = vmatpush1.msra.mxu0 0.0
    %541 = vmatprep.subr.mxu0 0.0
    %542 = vmatpush1.msra.mxu0 0.0
    %543 = vmatprep.subr.mxu0 0.0
    %544 = vmatpush1.msra.mxu0 0.0
    %545 = vmatprep.subr.mxu0 0.0
    %546 = vmatpush1.msra.mxu0 0.0
    %547 = vmatprep.subr.mxu0 0.0
    %548 = vmatpush1.msra.mxu0 0.0
    %549 = vmatprep.subr.mxu0 0.0
    %550 = vmatpush1.msra.mxu0 0.0
    %551 = vmatprep.subr.mxu0 0.0
    %552 = vmatpush1.msra.mxu0 0.0
    %553 = vmatprep.subr.mxu0 0.0
    %554 = vmatpush1.msra.mxu0 0.0
    %555 = vmatprep.subr.mxu0 0.0
    %556 = vmatpush1.msra.mxu0 0.0
    %557 = vmatprep.subr.mxu0 0.0
    %558 = vmatpush1.msra.mxu0 0.0
    %559 = vmatprep.subr.mxu0 0.0
    %560 = vmatpush1.msra.mxu0 0.0
    %561 = vmatprep.subr.mxu0 0.0
    %562 = vmatpush1.msra.mxu0 0.0
    %563 = vmatprep.subr.mxu0 0.0
    %564 = vmatpush1.msra.mxu0 0.0
    %565 = vmatprep.subr.mxu0 0.0
    %566 = vmatpush1.msra.mxu0 0.0
    %567 = vmatprep.subr.mxu0 0.0
    %568 = vmatpush1.msra.mxu0 0.0
    %569 = vmatprep.subr.mxu0 0.0
    %570 = vmatpush1.msra.mxu0 0.0
    %571 = vmatprep.subr.mxu0 0.0
    %572 = vmatpush1.msra.mxu0 0.0
    %573 = vmatprep.subr.mxu0 0.0
    %574 = vmatpush1.msra.mxu0 0.0
    %575 = vmatprep.subr.mxu0 0.0
    %576 = vmatpush1.msra.mxu0 0.0
    %577 = vmatprep.subr.mxu0 0.0
    %578 = vmatpush1.msra.mxu0 0.0
    %579 = vmatprep.subr.mxu0 0.0
    %580 = vmatpush1.msra.mxu0 0.0
    %581 = vmatprep.mubr.f32.mxu0 0.0
    %582 = vmatmul.mubr.f32.gmra.mrb[0].mxu0 %v309
    %v583 = vpop.f32.mrb[0].mxu0
    %v584 = vadd.f32 0.0, %v583
    %v585 = vpop.f32.mrb[0].mxu0
    %586 = vmatprep.mubr.f32.mxu0 0.0
    %587 = vmatmul.mubr.f32.gmra.mrb[0].mxu0 %v312
    %v588 = vpop.f32.mrb[0].mxu0
    %v589 = vadd.f32 0.0, %v588
    %v590 = vpop.f32.mrb[0].mxu0
    %591 = vmatprep.mubr.f32.mxu0 0.0
    %592 = vmatmul.mubr.f32.gmra.mrb[0].mxu0 %v315
    %v593 = vpop.f32.mrb[0].mxu0
    %v594 = vadd.f32 0.0, %v593
    %v595 = vpop.f32.mrb[0].mxu0
    %596 = vmatprep.mubr.f32.mxu0 0.0
    %597 = vmatmul.mubr.f32.gmra.mrb[0].mxu0 %v318
    %v598 = vpop.f32.mrb[0].mxu0
    %v599 = vadd.f32 0.0, %v598
    %v600 = vpop.f32.mrb[0].mxu0
    %601 = vmatprep.mubr.f32.mxu0 0.0
    %602 = vmatmul.mubr.f32.gmra.mrb[0].mxu0 %v321
    %v603 = vpop.f32.mrb[0].mxu0
    %v604 = vadd.f32 0.0, %v603
    %v605 = vpop.f32.mrb[0].mxu0
    %606 = vmatprep.mubr.f32.mxu0 0.0
    %607 = vmatmul.mubr.f32.gmra.mrb[0].mxu0 %v324
    %v608 = vpop.f32.mrb[0].mxu0
    %v609 = vadd.f32 0.0, %v608
    %v610 = vpop.f32.mrb[0].mxu0
    %611 = vmatprep.mubr.f32.mxu0 0.0
    %612 = vmatmul.mubr.f32.gmra.mrb[0].mxu0 %v327
    %v613 = vpop.f32.mrb[0].mxu0
    %v614 = vadd.f32 0.0, %v613
    %v615 = vpop.f32.mrb[0].mxu0
    %616 = vmatprep.mubr.f32.mxu0 0.0
    %617 = vmatmul.mubr.f32.gmra.mrb[0].mxu0 %v330
    %v618 = vpop.f32.mrb[0].mxu0
    %v619 = vadd.f32 0.0, %v618
    %v620 = vpop.f32.mrb[0].mxu0
    %621 = vmatprep.mubr.f32.mxu0 0.0
    %622 = vmatmul.mubr.f32.gmra.mrb[0].mxu0 %v333
    %v623 = vpop.f32.mrb[0].mxu0
    %v624 = vadd.f32 0.0, %v623
    %v625 = vpop.f32.mrb[0].mxu0
    %626 = vmatprep.mubr.f32.mxu0 0.0
    %627 = vmatmul.mubr.f32.gmra.mrb[0].mxu0 %v336
    %v628 = vpop.f32.mrb[0].mxu0
    %v629 = vadd.f32 0.0, %v628
    %v630 = vpop.f32.mrb[0].mxu0
    %631 = vmatprep.mubr.f32.mxu0 0.0
    %632 = vmatmul.mubr.f32.gmra.mrb[0].mxu0 %v339
    %v633 = vpop.f32.mrb[0].mxu0
    %v634 = vadd.f32 0.0, %v633
    %v635 = vpop.f32.mrb[0].mxu0
    %636 = vmatprep.mubr.f32.mxu0 0.0
    %637 = vmatmul.mubr.f32.gmra.mrb[0].mxu0 %v342
    %v638 = vpop.f32.mrb[0].mxu0
    %v639 = vadd.f32 0.0, %v638
    %v640 = vpop.f32.mrb[0].mxu0
    %641 = vmatprep.mubr.f32.mxu0 0.0
    %642 = vmatmul.mubr.f32.gmra.mrb[0].mxu0 %v345
    %v643 = vpop.f32.mrb[0].mxu0
    %v644 = vadd.f32 0.0, %v643
    %v645 = vpop.f32.mrb[0].mxu0
    %646 = vmatprep.mubr.f32.mxu0 0.0
    %647 = vmatmul.mubr.f32.gmra.mrb[0].mxu0 %v348
    %v648 = vpop.f32.mrb[0].mxu0
    %v649 = vadd.f32 0.0, %v648
    %v650 = vpop.f32.mrb[0].mxu0
    %651 = vmatprep.mubr.f32.mxu0 0.0
    %652 = vmatmul.mubr.f32.gmra.mrb[0].mxu0 %v351
    %v653 = vpop.f32.mrb[0].mxu0
    %v654 = vadd.f32 0.0, %v653
    %v655 = vpop.f32.mrb[0].mxu0
    %656 = vmatprep.mubr.f32.mxu0 0.0
    %657 = vmatmul.mubr.f32.gmra.mrb[0].mxu0 %v354
    %v658 = vpop.f32.mrb[0].mxu0
    %v659 = vadd.f32 0.0, %v658
    %v660 = vpop.f32.mrb[0].mxu0
    %661 = vdwg.mxu0
    %662 = vst [vmem:[#allocation2] sm:$0xff] %v423
    %663 = vst [vmem:[#allocation2 + $0x8] sm:$0xff] %v425
    %664 = vst [vmem:[#allocation2 + $0x10] sm:$0xff] %v584
    %665 = vst [vmem:[#allocation2 + $0x18] sm:$0xff] %v429
    %666 = vst [vmem:[#allocation2 + $0x20] sm:$0xff] %v431
    %667 = vst [vmem:[#allocation2 + $0x28] sm:$0xff] %v589
    %668 = vst [vmem:[#allocation2 + $0x30] sm:$0xff] %v435
    %669 = vst [vmem:[#allocation2 + $0x38] sm:$0xff] %v437
    %670 = vst [vmem:[#allocation2 + $0x40] sm:$0xff] %v594
    %671 = vst [vmem:[#allocation2 + $0x48] sm:$0xff] %v441
    %672 = vst [vmem:[#allocation2 + $0x50] sm:$0xff] %v443
    %673 = vst [vmem:[#allocation2 + $0x58] sm:$0xff] %v599
    %674 = vst [vmem:[#allocation2 + $0x60] sm:$0xff] %v447
    %675 = vst [vmem:[#allocation2 + $0x68] sm:$0xff] %v449
    %676 = vst [vmem:[#allocation2 + $0x70] sm:$0xff] %v604
    %677 = vst [vmem:[#allocation2 + $0x78] sm:$0xff] %v453
    %678 = vst [vmem:[#allocation2 + $0x80] sm:$0xff] %v455
    %679 = vst [vmem:[#allocation2 + $0x88] sm:$0xff] %v609
    %680 = vst [vmem:[#allocation2 + $0x90] sm:$0xff] %v459
    %681 = vst [vmem:[#allocation2 + $0x98] sm:$0xff] %v461
    %682 = vst [vmem:[#allocation2 + $0xa0] sm:$0xff] %v614
    %683 = vst [vmem:[#allocation2 + $0xa8] sm:$0xff] %v465
    %684 = vst [vmem:[#allocation2 + $0xb0] sm:$0xff] %v467
    %685 = vst [vmem:[#allocation2 + $0xb8] sm:$0xff] %v619
    %686 = vst [vmem:[#allocation2 + $0xc0] sm:$0xff] %v471
    %687 = vst [vmem:[#allocation2 + $0xc8] sm:$0xff] %v473
    %688 = vst [vmem:[#allocation2 + $0xd0] sm:$0xff] %v624
    %689 = vst [vmem:[#allocation2 + $0xd8] sm:$0xff] %v477
    %690 = vst [vmem:[#allocation2 + $0xe0] sm:$0xff] %v479
    %691 = vst [vmem:[#allocation2 + $0xe8] sm:$0xff] %v629
    %692 = vst [vmem:[#allocation2 + $0xf0] sm:$0xff] %v483
    %693 = vst [vmem:[#allocation2 + $0xf8] sm:$0xff] %v485
    %694 = vst [vmem:[#allocation2 + $0x100] sm:$0xff] %v634
    %695 = vst [vmem:[#allocation2 + $0x108] sm:$0xff] %v489
    %696 = vst [vmem:[#allocation2 + $0x110] sm:$0xff] %v491
    %697 = vst [vmem:[#allocation2 + $0x118] sm:$0xff] %v639
    %698 = vst [vmem:[#allocation2 + $0x120] sm:$0xff] %v495
    %699 = vst [vmem:[#allocation2 + $0x128] sm:$0xff] %v497
    %700 = vst [vmem:[#allocation2 + $0x130] sm:$0xff] %v644
    %701 = vst [vmem:[#allocation2 + $0x138] sm:$0xff] %v501
    %702 = vst [vmem:[#allocation2 + $0x140] sm:$0xff] %v503
    %703 = vst [vmem:[#allocation2 + $0x148] sm:$0xff] %v649
    %704 = vst [vmem:[#allocation2 + $0x150] sm:$0xff] %v507
    %705 = vst [vmem:[#allocation2 + $0x158] sm:$0xff] %v509
    %706 = vst [vmem:[#allocation2 + $0x160] sm:$0xff] %v654
    %707 = vst [vmem:[#allocation2 + $0x168] sm:$0xff] %v513
    %708 = vst [vmem:[#allocation2 + $0x170] sm:$0xff] %v515
    %709 = vst [vmem:[#allocation2 + $0x178] sm:$0xff] %v659
    // Predicated region
    $region14: #{tpu_custom_call.1} parent=1 // pred_check
      _
    $region15: #{tpu_custom_call.1} parent=1 // pred_check_branch
      %711 = sbr.rel (0) target = $region17
    $region16: #{tpu_custom_call.1} parent=1 // pred_region
      %s713 = ssub.s32 6144, 6144
      %714 = vsyncadd [#allocation3], %s713
      %s715 = sshll.u32 [#allocation2], 4
      %s716 = int_to_ptr.vmem [resolvable:$true] %s715
      %721 = dma.vmem_to_hbm [thread:$0]  %s716, 6144, %s3, [#allocation3], 384, 384, 24
    $region17: #{tpu_custom_call.1} parent=1 // pred_fallthru
      _
    // Predicated region
    $region18: #{tpu_custom_call.1} parent=1 // pred_check
      _
    $region19: #{tpu_custom_call.1} parent=1 // pred_check_branch
      %723 = sbr.rel (0) target = $region21
    $region20: #{tpu_custom_call.1} parent=1 // pred_region
      %724 = dma.done [#allocation3], 6144
    $region21: #{tpu_custom_call.1} parent=1 // pred_fallthru
      _
    %725 = vsyncpa [#allocation3], 1

</llo_original>
